<compile_context>
chip_gen: v7x
topology: tpu7x:2x2x1
jax: 0.10.0
libtpu: 0.0.40
codegen_flags: <defaults>
</compile_context>

<pallas_src>
import math

import jax
import jax.numpy as jnp
from jax.experimental import pallas as pl
from jax.experimental.pallas import tpu as pltpu


def _elementwise_linear_kernel(x_ref, wb_ref, o_ref):
    # x_ref: (tile_rows, W) in x dtype; wb_ref: (2, W) f32 = [weight; bias].
    w = wb_ref[0:1, :]
    b = wb_ref[1:2, :]
    x = x_ref[...].astype(jnp.float32)
    o_ref[...] = (x * w + b).astype(o_ref.dtype)


def _pick_lane_width(n_rows, size):
    """Pick a lane width W so x.reshape(rows, W) is lane-dense (W % 128 == 0)
    and weight/bias tile evenly into a W-wide row (W % size == 0)."""
    if size % 128 == 0:
        return size, n_rows
    total = n_rows * size
    lcm = size * 128 // math.gcd(size, 128)
    candidates = {128, 256, 512, 1024}
    for m in (1, 2, 4, 8):
        w = lcm * m
        if w <= 4096:
            candidates.add(w)
    for w in sorted(candidates, reverse=True):
        if w % size == 0 and w % 128 == 0 and total % w == 0:
            return w, total // w
    # Fall back: lane dim == full array last dim (legal BlockSpec since it
    # equals the full array dim) -- stores may be masked, but still correct.
    return size, n_rows


def plan_lane_width(x_shape):
    """Lane width the wrapper will pick for a given x shape (for wb caching)."""
    size = x_shape[-1]
    n_rows = math.prod(x_shape[:-1])
    lane_w, _ = _pick_lane_width(n_rows, size)
    return lane_w


def pack_params(weight, bias, lane_w, compute_dtype=jnp.float32):
    """Pack weight/bias into the (2, lane_w) operand the kernel expects.
    Callers with static parameters can cache this to trim per-call HLOs."""
    size = weight.shape[-1]
    rep = lane_w // size
    w_row = jnp.tile(weight.astype(compute_dtype), rep).reshape(1, lane_w)
    b_row = jnp.tile(bias.astype(compute_dtype), rep).reshape(1, lane_w)
    return jnp.concatenate([w_row, b_row], axis=0)


def _vmem_capacity_bytes():
    try:
        cap = getattr(pltpu.get_tpu_info(), "vmem_capacity_bytes", None)
        if cap:
            return int(cap)
    except Exception:
        pass
    return 64 << 20  # conservative fallback: v7x per-TensorCore VMEM


def elementwise_linear(x, weight=None, bias=None, *,
                       packed_wb=None,
                       vmem_budget_bytes=24 << 20,
                       min_pallas_elems=256 * 1024):
    """y = x * weight + bias with trailing-dim broadcasting.

    x: (..., size); weight, bias: (size,) or None (treated as ones/zeros,
    i.e. the corresponding op is a no-op, matching the module).
    """
    orig_shape = x.shape
    size = orig_shape[-1]
    n_rows = math.prod(orig_shape[:-1])

    dtypes = [x.dtype] + [p.dtype for p in (weight, bias) if p is not None]
    out_dtype = jnp.result_type(*dtypes)
    if weight is None:
        weight = jnp.ones((size,), out_dtype)
    if bias is None:
        bias = jnp.zeros((size,), out_dtype)
    assert weight.shape == (size,) and bias.shape == (size,)

    if x.size < min_pallas_elems:
        # Tiny input: pallas_call launch + DMA overhead dominates; XLA wins.
        return (x * weight + bias).astype(out_dtype)

    lane_w, rows = _pick_lane_width(n_rows, size)
    x2 = x.reshape(rows, lane_w)

    if packed_wb is not None and tuple(packed_wb.shape) == (2, lane_w):
        wb = packed_wb.astype(jnp.float32)
    else:
        wb = pack_params(weight, bias, lane_w)

    in_itemsize = x2.dtype.itemsize
    out_itemsize = jnp.dtype(out_dtype).itemsize
    bytes_per_row_in = lane_w * in_itemsize
    bytes_per_row_io = lane_w * (in_itemsize + out_itemsize)

    # Budget cap by chip: stay well inside physical VMEM (64 MiB/TC on v7x,
    # 128 MiB on v5e/v6e), leaving room for Mosaic internal scratch.
    vmem_cap = _vmem_capacity_bytes()
    budget = min(int(vmem_budget_bytes), max(8 << 20, (vmem_cap * 5) // 8))

    # Row tile: double-buffered input + output tiles within the budget, with a
    # ~2 MiB per-tile floor so the stream stays near the HBM roofline even if
    # a caller passes a tiny budget.
    min_tile_rows = -(-(2 << 20) // bytes_per_row_in)
    budget_rows = budget // (2 * bytes_per_row_io)
    tile_rows = min(rows, max(min_tile_rows, budget_rows))
    if tile_rows < rows:
        # Dtype-aware sublane alignment: 8 rows for 32-bit, 16 for bf16,
        # 32 for int8/fp8 (sub-32-bit dtypes pack along sublanes).
        align = max(8, 32 // in_itemsize)
        tile_rows = max(align, (tile_rows // align) * align)

    footprint = 2 * tile_rows * bytes_per_row_io + 2 * 2 * lane_w * 4
    vmem_limit = int(min(max(footprint + (2 << 20), 16 << 20),
                         max(24 << 20, vmem_cap - (16 << 20))))

    out = pl.pallas_call(
        _elementwise_linear_kernel,
        out_shape=jax.ShapeDtypeStruct((rows, lane_w), out_dtype),
        grid_spec=pltpu.PrefetchScalarGridSpec(
            num_scalar_prefetch=0,
            grid=(pl.cdiv(rows, tile_rows),),  # ragged last block handled by Pallas
            in_specs=[
                pl.BlockSpec((tile_rows, lane_w), lambda i: (i, 0)),
                pl.BlockSpec((2, lane_w), lambda i: (0, 0)),  # resident, DMA'd once
            ],
            out_specs=pl.BlockSpec((tile_rows, lane_w), lambda i: (i, 0)),
        ),
        # "parallel" lets the row axis shard across both TensorCores on v7x
        # (megacore); it is a harmless no-op on single-TC v5e/v6e.
        compiler_params=pltpu.CompilerParams(
            dimension_semantics=("parallel",),
            vmem_limit_bytes=vmem_limit,
        ),
    )(x2, wb)

    return out.reshape(orig_shape)
    # TODO(synk): inplace=True (x.mul_/add_) has no JAX equivalent; result is
    # returned out-of-place, which is semantically identical for callers.


if __name__ == "__main__":
    # 1) Small demo consistent with the module: batch=2, nodes=4, hidden=32,
    #    with reset_parameters() values (weight=ones, bias=zeros).
    key = jax.random.PRNGKey(0)
    x = jax.random.normal(key, (2, 4, 32), dtype=jnp.float32)
    weight = jnp.ones((32,), dtype=jnp.float32)
    bias = jnp.zeros((32,), dtype=jnp.float32)
    y = jax.block_until_ready(
        elementwise_linear(x, weight, bias, min_pallas_elems=0))  # force kernel path
    assert y.shape == x.shape and y.dtype == x.dtype
    assert jnp.allclose(y, x * weight + bias, atol=1e-6), "demo mismatch"

    # 2) Multi-block grid with a ragged final block and non-trivial params.
    #    The tiny budget is overridden by the 2 MiB tile floor -> 2048-row tiles.
    k1, k2, k3 = jax.random.split(jax.random.PRNGKey(0), 3)
    x_big = jax.random.normal(k1, (5000, 256), dtype=jnp.float32)
    w_big = jax.random.normal(k2, (256,), dtype=jnp.float32)
    b_big = jax.random.normal(k3, (256,), dtype=jnp.float32)
    y_big = jax.block_until_ready(
        elementwise_linear(x_big, w_big, b_big, min_pallas_elems=0,
                           vmem_budget_bytes=1 << 20))
    assert jnp.allclose(y_big, x_big * w_big + b_big, atol=1e-5), "tiled mismatch"

    # 3) Awkward size (192 -> lcm-based lane-dense width) with bf16 activations,
    #    exercising the cached/prepacked-wb path and f32 promotion parity.
    k4, k5, k6 = jax.random.split(jax.random.PRNGKey(1), 3)
    x_bf = jax.random.normal(k4, (512, 192), dtype=jnp.bfloat16)
    w_bf = jax.random.normal(k5, (192,), dtype=jnp.float32)
    b_bf = jax.random.normal(k6, (192,), dtype=jnp.float32)
    lane_w = plan_lane_width(x_bf.shape)
    wb_cached = pack_params(w_bf, b_bf, lane_w)
    y_bf = jax.block_until_ready(
        elementwise_linear(x_bf, w_bf, b_bf, packed_wb=wb_cached,
                           min_pallas_elems=0))
    ref_bf = x_bf.astype(jnp.float32) * w_bf + b_bf
    assert y_bf.dtype == jnp.float32
    assert jnp.allclose(y_bf, ref_bf, atol=1e-5, rtol=1e-5), "bf16 mismatch"

    print("KERNEL_OK")
</pallas_src>

<mosaic_0001>
module attributes {stable_mosaic.version = 11 : i64} {
  func.func @_elementwise_linear_kernel(%arg0: i32, %arg1: memref<1x256xf32, #tpu.memory_space<vmem>>, %arg2: memref<2x256xf32, #tpu.memory_space<vmem>>, %arg3: memref<1x256xf32, #tpu.memory_space<vmem>>) attributes {dimension_semantics = [#tpu.dimension_semantics<parallel>], iteration_bounds = array<i64: 1>, scalar_prefetch = 0 : i64, scratch_operands = 0 : i64, tpu.core_type = #tpu.core_type<tc>, window_params = [{transform_indices = @transform_0, window_bounds = array<i64: 1, 256>}, {pipeline_mode = #tpu.pipeline_mode<synchronous>, transform_indices = @transform_1, window_bounds = array<i64: 2, 256>}, {transform_indices = @transform_2, window_bounds = array<i64: 1, 256>}]} {
    %c0 = arith.constant 0 : index
    %c0_0 = arith.constant 0 : index
    %0 = vector.load %arg2[%c0, %c0_0] : memref<2x256xf32, #tpu.memory_space<vmem>>, vector<1x256xf32>
    %c1 = arith.constant 1 : index
    %c0_1 = arith.constant 0 : index
    %1 = vector.load %arg2[%c1, %c0_1] : memref<2x256xf32, #tpu.memory_space<vmem>>, vector<1x256xf32>
    %c0_2 = arith.constant 0 : index
    %c0_3 = arith.constant 0 : index
    %2 = vector.load %arg1[%c0_2, %c0_3] : memref<1x256xf32, #tpu.memory_space<vmem>>, vector<1x256xf32>
    %3 = arith.mulf %2, %0 : vector<1x256xf32>
    %4 = arith.addf %3, %1 : vector<1x256xf32>
    %c0_4 = arith.constant 0 : index
    %c0_5 = arith.constant 0 : index
    %5 = vector.load %arg3[%c0_4, %c0_5] : memref<1x256xf32, #tpu.memory_space<vmem>>, vector<1x256xf32>
    tpu.vector_store %arg3[%c0_4, %c0_5], %4 {strides = array<i32>} : memref<1x256xf32, #tpu.memory_space<vmem>>, vector<1x256xf32>,
    return
  }
  func.func @transform_0(%arg0: i32) -> (i32, i32) {
    %c0_i32 = arith.constant 0 : i32
    %c0_i32_0 = arith.constant 0 : i32
    return %arg0, %c0_i32 : i32, i32
  }
  func.func @transform_1(%arg0: i32) -> (i32, i32) {
    %c0_i32 = arith.constant 0 : i32
    %c0_i32_0 = arith.constant 0 : i32
    %c0_i32_1 = arith.constant 0 : i32
    return %c0_i32, %c0_i32_0 : i32, i32
  }
  func.func @transform_2(%arg0: i32) -> (i32, i32) {
    %c0_i32 = arith.constant 0 : i32
    %c0_i32_0 = arith.constant 0 : i32
    return %arg0, %c0_i32 : i32, i32
  }
}

</mosaic_0001>

<llo_original>
// kernel: tpu_custom_call.1
$region0: #{tpu_custom_call.1}
  #allocation0 [shape = 'u32[]', space=smem, size = 0x4, offset = 0x4, fixed_abs, tag = 'smem constant byte address 0x4 - core index']
  #allocation1 [shape = 'u32[144,128]{1,0:T(1,128)}', space=vmem, size = 0x12000, scoped, tag = 'internal scratch']
  %s0 = inlined_call_operand.hbm [shape: f32[1,256], index: 0, kind: input, shape index: {}]
  %s1 = inlined_call_operand.hbm [shape: f32[2,256], index: 1, kind: input, shape index: {}]
  %s2 = inlined_call_operand.hbm [shape: f32[1,256], index: 2, kind: output, shape index: {}]
  %s3 = sld [smem:[#allocation0]]
  $region26: #{tpu_custom_call.1} parent=0
    _
  %s5 = ssub.s32 1, %s3
  %s6 = scalar_select 0, %s5, %s3
  $region1: #{tpu_custom_call.1} parent=0
    #allocation2 [shape = 'u8[1024]{0}', space=vmem, size = 0x400, scoped, tag = 'input window, operand 0, single buffered']
    #allocation3 [shape = 's32[1]{0}', space=sflag, size = 0x4, scoped, tag = 'scoped memory for tpu_custom_call.1']
    #allocation4 [shape = 's32[1]{0}', space=sflag, size = 0x4, scoped, tag = 'scoped memory for tpu_custom_call.1']
    #allocation5 [shape = 'u8[2048]{0}', space=vmem, size = 0x800, scoped, tag = 'input window, operand 1, single buffered']
    #allocation6 [shape = 's32[1]{0}', space=sflag, size = 0x4, scoped, tag = 'scoped memory for tpu_custom_call.1']
    #allocation7 [shape = 'u8[1024]{0}', space=vmem, size = 0x400, scoped, tag = 'output window, operand 0, single buffered']
    %7 = vsyncpa [#allocation3], 0
    %8 = vsyncpa [#allocation6], 0
    %9 = vsyncpa [#allocation4], 0
    // Predicated region
    $region2: #{tpu_custom_call.1} parent=1 // pred_check
      _
    $region3: #{tpu_custom_call.1} parent=1 // pred_check_branch
      %11 = sbr.rel (0) target = $region5
    $region4: #{tpu_custom_call.1} parent=1 // pred_region
      %s13 = ssub.s32 32, 32
      %14 = vsyncadd [#allocation3], %s13
      %s16 = sshll.u32 [#allocation2], 4
      %s17 = int_to_ptr.vmem [resolvable:$true] %s16
      %19 = dma.hbm_to_vmem [thread:$0]  %s0, 32, %s17, [#allocation3]
    $region5: #{tpu_custom_call.1} parent=1 // pred_fallthru
      _
    // Predicated region
    $region6: #{tpu_custom_call.1} parent=1 // pred_check
      _
    $region7: #{tpu_custom_call.1} parent=1 // pred_check_branch
      %21 = sbr.rel (0) target = $region9
    $region8: #{tpu_custom_call.1} parent=1 // pred_region
      %s23 = ssub.s32 64, 64
      %24 = vsyncadd [#allocation6], %s23
      %s26 = sshll.u32 [#allocation5], 4
      %s27 = int_to_ptr.vmem [resolvable:$true] %s26
      %29 = dma.hbm_to_vmem [thread:$0]  %s1, 64, %s27, [#allocation6]
    $region9: #{tpu_custom_call.1} parent=1 // pred_fallthru
      _
    // Predicated region
    $region10: #{tpu_custom_call.1} parent=1 // pred_check
      _
    $region11: #{tpu_custom_call.1} parent=1 // pred_check_branch
      %31 = sbr.rel (0) target = $region13
    $region12: #{tpu_custom_call.1} parent=1 // pred_region
      %32 = dma.done [#allocation3], 32
    $region13: #{tpu_custom_call.1} parent=1 // pred_fallthru
      _
    // Predicated region
    $region14: #{tpu_custom_call.1} parent=1 // pred_check
      _
    $region15: #{tpu_custom_call.1} parent=1 // pred_check_branch
      %34 = sbr.rel (0) target = $region17
    $region16: #{tpu_custom_call.1} parent=1 // pred_region
      %35 = dma.done [#allocation6], 64
    $region17: #{tpu_custom_call.1} parent=1 // pred_fallthru
      _
    %v36 = vld [vmem:[#allocation5] ss:$2 sm:$0x3]
    %s37 = scalar_lea.vmem [#allocation5], 1
    %v38 = vld [vmem:[%s37] ss:$2 sm:$0x3]
    %v39 = vld [vmem:[#allocation2] sm:$0x3]
    %v40 = vmul.f32 %v39, %v36
    %v41 = vadd.f32 %v40, %v38
    %v42 = vlaneseq
    %vm43 = vcmp.ge.s32.totalorder %v42, 0
    %vm44 = vcmp.lt.s32.totalorder %v42, 256
    %vm45 = vmand %vm43, %vm44
    %46 = vst.msk [vmem:[#allocation7] sm:$0x3] %vm45, %v41
    // Predicated region
    $region18: #{tpu_custom_call.1} parent=1 // pred_check
      _
    $region19: #{tpu_custom_call.1} parent=1 // pred_check_branch
      %48 = sbr.rel (0) target = $region21
    $region20: #{tpu_custom_call.1} parent=1 // pred_region
      %s50 = ssub.s32 32, 32
      %51 = vsyncadd [#allocation4], %s50
      %s53 = sshll.u32 [#allocation7], 4
      %s54 = int_to_ptr.vmem [resolvable:$true] %s53
      %56 = dma.vmem_to_hbm [thread:$0]  %s54, 32, %s2, [#allocation4]
    $region21: #{tpu_custom_call.1} parent=1 // pred_fallthru
      _
    // Predicated region
    $region22: #{tpu_custom_call.1} parent=1 // pred_check
      _
    $region23: #{tpu_custom_call.1} parent=1 // pred_check_branch
      %58 = sbr.rel (0) target = $region25
    $region24: #{tpu_custom_call.1} parent=1 // pred_region
      %59 = dma.done [#allocation4], 32
    $region25: #{tpu_custom_call.1} parent=1 // pred_fallthru
      _
    %60 = vsyncpa [#allocation3], 1
    %61 = vsyncpa [#allocation6], 1
    %62 = vsyncpa [#allocation4], 1

</llo_original>
